<compile_context>
chip_gen: v5e
topology: v5e:2x2
jax: 0.10.0
libtpu: 0.0.40
codegen_flags: <defaults>
</compile_context>

<pallas_src>
import jax
import jax.numpy as jnp
from jax.experimental import pallas as pl
from jax.experimental.pallas import tpu as pltpu

SMEM = pltpu.MemorySpace.SMEM

LANE = 128           # lane padding target for the hidden dimension
TILE_ROWS = 256      # message-row (ground atom) tile for the fused relation-group kernel
TILE_NODES = 512     # node-row tile for the update MLP kernel
NEG_LARGE = -1e9     # fill for padded lanes / masked rows (exp(8*(NEG_LARGE - m)) == 0)
NUM_PREFETCH = 2     # scalar-prefetch operands of the fused relation-group kernel


def _default_vmem_limit():
    try:
        cap = int(pltpu.get_tpu_info().vmem_capacity_bytes)
        return max(32 * 1024 * 1024, min(3 * cap // 4, 64 * 1024 * 1024))
    except Exception:
        return 48 * 1024 * 1024


VMEM_LIMIT = _default_vmem_limit()


def _round_up(x, m):
    return (x + m - 1) // m * m


def _row_tiling(rows, tile_max):
    """Pick (tile, padded_rows) for the node axis: whole array if small, else big tiles."""
    padded = _round_up(max(rows, 1), 8)
    if padded <= tile_max:
        return padded, padded
    return tile_max, _round_up(rows, tile_max)


def _group_tile(rels, tile_max):
    """Message-row tile for an arity group; always a multiple of 128 (lane-clean blocks)."""
    biggest = max(_round_up(t, LANE) for _, _, t in rels)
    return min(tile_max, biggest)


# ---------------------------------------------------------------------------
# Kernel 1 (fused, per arity group): relation MLP -> online smooth-max -> exp ->
# fused bf16 scatter-add matmul.  grid = (message-row tiles,), "arbitrary" (the
# accumulator and the running max stay resident in VMEM across the whole group).
# Scalar prefetch: per-tile relation id (selects the stacked weight block) and
# per-tile number of valid ground atoms.
# ---------------------------------------------------------------------------
def _fused_group_kernel(rel_ids_ref, nvalid_ref,                 # scalar prefetch (SMEM)
                        x_ref, idx_ref, w1_ref, b1_ref, w2_ref, b2_ref,
                        acc_in_ref, m_in_ref,
                        acc_ref, m_out_ref,
                        m_sc):
    del rel_ids_ref  # only consumed by the index_maps (weight-stack selection)
    tile = pl.program_id(0)
    ntiles = pl.num_programs(0)
    arity, tile_t = idx_ref.shape
    a_hp = x_ref.shape[1]
    hp = a_hp // arity
    npad = acc_ref.shape[0]

    @pl.when(tile == 0)
    def _init():
        acc_ref[...] = acc_in_ref[...]      # accumulator carried across arity groups (aliased)
        m_sc[...] = m_in_ref[...]           # running max carried across arity groups

    # ---- relation MLP: Linear -> ReLU -> Linear (bf16 MXU operands, f32 accumulation)
    h = jnp.dot(x_ref[...], w1_ref[0], preferred_element_type=jnp.float32) + b1_ref[0]
    h = jnp.maximum(h, 0.0)
    y = jnp.dot(h.astype(jnp.bfloat16), w2_ref[0],
                preferred_element_type=jnp.float32) + b2_ref[0]   # pad lanes == -1e9

    # ---- mask rows beyond the real ground atoms of this tile.  Masked rows / padded
    #      lanes sit at -1e9, so their exps underflow to exactly 0 (no inf/NaN possible).
    nvalid = nvalid_ref[tile]
    row = jax.lax.broadcasted_iota(jnp.int32, (tile_t, 1), 0)
    y = jnp.where(row < nvalid, y, NEG_LARGE)

    tile_max = jnp.max(jnp.max(y, axis=1, keepdims=True), axis=0, keepdims=True)  # (1,1)
    m_prev = m_sc[...]
    m_new = jnp.maximum(m_prev, tile_max)
    m_sc[...] = m_new

    exps = jnp.exp(8.0 * (y - m_new))                             # f32, values in [0, 1]

    # ---- fused scatter-add over all arity slots: one bf16 MXU matmul, K = arity*tile_t
    exps_stk = jnp.concatenate(
        [exps[:, j * hp:(j + 1) * hp].astype(jnp.bfloat16) for j in range(arity)], axis=0)
    iota_n = jax.lax.broadcasted_iota(jnp.int32, (npad, tile_t), 0)
    idx = idx_ref[...]                                            # [arity, tile_t] int32
    onehot = jnp.concatenate(
        [(iota_n == idx[j:j + 1, :]).astype(jnp.bfloat16) for j in range(arity)], axis=1)
    contrib = jnp.dot(onehot, exps_stk, preferred_element_type=jnp.float32)   # [npad, hp]

    # ---- online log-sum-exp: rescale the resident accumulator when the max grows
    acc_ref[...] = acc_ref[...] * jnp.exp(8.0 * (m_prev - m_new)) + contrib

    @pl.when(tile == ntiles - 1)
    def _finalize():
        m_out_ref[...] = m_sc[...]


def _relation_group_call(rel_ids, nvalid, x, idx, w1, b1, w2, b2, acc, m, *, tile_t):
    tp, a_hp = x.shape
    arity = idx.shape[0]
    npad, hp = acc.shape
    num_tiles = tp // tile_t
    grid_spec = pltpu.PrefetchScalarGridSpec(
        num_scalar_prefetch=NUM_PREFETCH,
        grid=(num_tiles,),
        in_specs=[
            pl.BlockSpec((tile_t, a_hp), lambda i, r, nv: (i, 0)),         # gathered inputs
            pl.BlockSpec((arity, tile_t), lambda i, r, nv: (0, i)),        # node indices
            pl.BlockSpec((1, a_hp, a_hp), lambda i, r, nv: (r[i], 0, 0)),  # W1 stack (bf16)
            pl.BlockSpec((1, 1, a_hp), lambda i, r, nv: (r[i], 0, 0)),     # b1 stack (f32)
            pl.BlockSpec((1, a_hp, a_hp), lambda i, r, nv: (r[i], 0, 0)),  # W2 stack (bf16)
            pl.BlockSpec((1, 1, a_hp), lambda i, r, nv: (r[i], 0, 0)),     # b2 stack (f32)
            pl.BlockSpec((npad, hp), lambda i, r, nv: (0, 0)),             # acc in (aliased)
            pl.BlockSpec((1, 1), lambda i, r, nv: (0, 0)),                 # running max in
        ],
        out_specs=(
            pl.BlockSpec((npad, hp), lambda i, r, nv: (0, 0)),             # acc out (resident)
            pl.BlockSpec((1, 1), lambda i, r, nv: (0, 0)),                 # running max out
        ),
        scratch_shapes=[pltpu.VMEM((1, 1), jnp.float32)],
    )
    return pl.pallas_call(
        _fused_group_kernel,
        grid_spec=grid_spec,
        out_shape=(jax.ShapeDtypeStruct((npad, hp), jnp.float32),
                   jax.ShapeDtypeStruct((1, 1), jnp.float32)),
        input_output_aliases={NUM_PREFETCH + 6: 0},               # acc accumulates in place
        compiler_params=pltpu.CompilerParams(
            dimension_semantics=("arbitrary",),
            vmem_limit_bytes=VMEM_LIMIT,
        ),
    )(rel_ids, nvalid, x, idx, w1, b1, w2, b2, acc, m)


# ---------------------------------------------------------------------------
# Kernel 2: update MLP.  max_msg = log(acc + 1e-16)/8 + max_offset; the concat with the
# node states is folded into two K=hp matmuls (no concat scratch).
# grid = (node-row tiles,), "parallel" (megacore on v7x).
# ---------------------------------------------------------------------------
def _update_kernel(acc_ref, node_ref, m_ref, w1_ref, b1_ref, w2_ref, b2_ref, out_ref):
    hp = node_ref.shape[1]
    moff = m_ref[0, 0]
    max_msg = (0.125 * jnp.log(acc_ref[...] + 1e-16) + moff).astype(jnp.bfloat16)
    w1 = w1_ref[...]                                               # [2*hp, h2p] bf16
    h = (jnp.dot(max_msg, w1[:hp, :], preferred_element_type=jnp.float32)
         + jnp.dot(node_ref[...], w1[hp:, :], preferred_element_type=jnp.float32)
         + b1_ref[...])
    h = jnp.maximum(h, 0.0)
    out_ref[...] = jnp.dot(h.astype(jnp.bfloat16), w2_ref[...],
                           preferred_element_type=jnp.float32) + b2_ref[...]


def _update_call(acc, node_bf16, m, w1, b1, w2, b2, *, tile_n):
    npad, hp = acc.shape
    grid = (npad // tile_n,)
    return pl.pallas_call(
        _update_kernel,
        grid=grid,
        in_specs=[
            pl.BlockSpec((tile_n, hp), lambda i: (i, 0)),          # exp accumulator (f32)
            pl.BlockSpec((tile_n, hp), lambda i: (i, 0)),          # node states (bf16)
            pl.BlockSpec(memory_space=SMEM),                       # max offset (1,1) f32
            pl.BlockSpec(w1.shape, lambda i: (0, 0)),              # W1 (bf16) [2*hp, h2p]
            pl.BlockSpec(b1.shape, lambda i: (0, 0)),              # b1 (f32)
            pl.BlockSpec(w2.shape, lambda i: (0, 0)),              # W2 (bf16)
            pl.BlockSpec(b2.shape, lambda i: (0, 0)),              # b2 (f32)
        ],
        out_specs=pl.BlockSpec((tile_n, hp), lambda i: (i, 0)),
        out_shape=jax.ShapeDtypeStruct((npad, hp), jnp.float32),
        compiler_params=pltpu.CompilerParams(
            dimension_semantics=("parallel",),
            vmem_limit_bytes=VMEM_LIMIT,
        ),
    )(acc, node_bf16, m, w1, b1, w2, b2)


# ---------------------------------------------------------------------------
# Parameter packing: zero-block-pad hidden to 128 lanes, weights -> bf16, and stack
# same-arity relations so a whole arity group runs in a single pallas_call.
# ---------------------------------------------------------------------------
def _pad_blocks(w, h_in, hp_in, h_out, hp_out):
    a_in = w.shape[0] // h_in
    a_out = w.shape[1] // h_out
    wb = w.reshape(a_in, h_in, a_out, h_out)
    out = jnp.zeros((a_in, hp_in, a_out, hp_out), w.dtype).at[:, :h_in, :, :h_out].set(wb)
    return out.reshape(a_in * hp_in, a_out * hp_out)


def _pad_bias(b, h, hp, pad_value=0.0):
    a = b.shape[1] // h
    out = jnp.full((a, hp), pad_value, b.dtype).at[:, :h].set(b.reshape(a, h))
    return out.reshape(1, a * hp)


def pack_params(rel_params, upd_params, relations, hidden):
    hp = _round_up(hidden, LANE)
    h2p = _round_up(2 * hidden, LANE)
    groups = {}
    for rel_id, arity in relations:
        p = rel_params.get(rel_id)
        if p is None or arity <= 0:
            continue
        g = groups.setdefault(arity, {"rel_pos": {}, "w1": [], "b1": [], "w2": [], "b2": []})
        g["rel_pos"][rel_id] = len(g["w1"])
        g["w1"].append(_pad_blocks(p["w1"], hidden, hp, hidden, hp).astype(jnp.bfloat16))
        g["b1"].append(_pad_bias(p["b1"], hidden, hp, 0.0))
        g["w2"].append(_pad_blocks(p["w2"], hidden, hp, hidden, hp).astype(jnp.bfloat16))
        # padded output lanes get a large negative bias: never win the max, exps == 0
        g["b2"].append(_pad_bias(p["b2"], hidden, hp, NEG_LARGE))
    rel_groups = {}
    for arity, g in groups.items():
        rel_groups[arity] = dict(
            rel_pos=g["rel_pos"],
            w1=jnp.stack(g["w1"]), b1=jnp.stack(g["b1"]),
            w2=jnp.stack(g["w2"]), b2=jnp.stack(g["b2"]),
        )
    upd_dev = dict(
        w1=_pad_blocks(upd_params["w1"], hidden, hp, 2 * hidden, h2p).astype(jnp.bfloat16),
        b1=_pad_bias(upd_params["b1"], 2 * hidden, h2p, 0.0),
        w2=_pad_blocks(upd_params["w2"], 2 * hidden, h2p, hidden, hp).astype(jnp.bfloat16),
        b2=_pad_bias(upd_params["b2"], hidden, hp, 0.0),
    )
    return rel_groups, upd_dev


# ---------------------------------------------------------------------------
# Full forward (Pallas-backed), mirroring RelationMessagePassing.forward
# ---------------------------------------------------------------------------
def forward(node_states, relation_values, relations, rel_groups, upd_dev):
    n, hidden = node_states.shape
    hp = _round_up(hidden, LANE)
    tile_n, npad = _row_tiling(n + 1, TILE_NODES)     # +1: dummy row for padded messages

    node_pad = jnp.zeros((npad, hp), jnp.float32).at[:n, :hidden].set(node_states)
    node_bf16 = node_pad.astype(jnp.bfloat16)

    # active relations, grouped by arity
    active = {}
    for rel_id, arity in relations:
        if arity not in rel_groups or rel_id not in rel_groups[arity]["rel_pos"]:
            continue
        if rel_id not in relation_values:
            continue
        values = relation_values[rel_id].astype(jnp.int32)
        t = values.shape[0] // arity
        if t == 0:
            continue
        active.setdefault(arity, []).append((rel_id, values.reshape(t, arity), t))
    if not active:
        raise ValueError("RelationMessagePassing: no active relations")

    acc = jnp.zeros((npad, hp), jnp.float32)          # sum of exp(8*(y - running_max))
    m = jnp.full((1, 1), -1e30, jnp.float32)          # running max (online log-sum-exp)

    for arity, rels in sorted(active.items()):
        g = rel_groups[arity]
        tile_t = _group_tile(rels, TILE_ROWS)
        vals_list, rel_tiles, nvalid_tiles = [], [], []
        for rel_id, vals2, t in rels:
            tpad_r = _round_up(t, tile_t)
            # padded ground atoms point at the dummy node row n; their exps are exactly 0
            vals_list.append(jnp.full((tpad_r, arity), n, jnp.int32).at[:t].set(vals2))
            ntr = tpad_r // tile_t
            rel_tiles += [g["rel_pos"][rel_id]] * ntr
            nvalid_tiles += [tile_t] * (ntr - 1) + [t - (ntr - 1) * tile_t]
        vals_all = jnp.concatenate(vals_list, axis=0)              # [TP, arity]
        tp = vals_all.shape[0]
        # TODO(synk): stream this gather through the Pallas pipeline instead of jnp.take.
        x = jnp.take(node_bf16, vals_all.reshape(-1), axis=0).reshape(tp, arity * hp)
        idx_sm = vals_all.T                                         # [arity, TP] slot-major
        rel_ids = jnp.asarray(rel_tiles, dtype=jnp.int32)
        nvalid = jnp.asarray(nvalid_tiles, dtype=jnp.int32)
        acc, m = _relation_group_call(rel_ids, nvalid, x, idx_sm,
                                      g["w1"], g["b1"], g["w2"], g["b2"],
                                      acc, m, tile_t=tile_t)

    out = _update_call(acc, node_bf16, m, upd_dev["w1"], upd_dev["b1"],
                       upd_dev["w2"], upd_dev["b2"], tile_n=tile_n)
    return out[:n, :hidden]


# ---------------------------------------------------------------------------
# Pure-JAX references (PyTorch semantics) for verification
# ---------------------------------------------------------------------------
def reference_forward(node_states, relation_values, relations, rel_params, upd_params):
    n, hidden = node_states.shape
    outs, maxes = [], []
    for rel_id, arity in relations:
        p = rel_params[rel_id]
        if p is None or rel_id not in relation_values:
            continue
        values = relation_values[rel_id]
        x = node_states[values].reshape(-1, arity * hidden)
        h = jnp.maximum(x @ p["w1"] + p["b1"], 0.0)
        y = (h @ p["w2"] + p["b2"]).reshape(-1, hidden)
        maxes.append(jnp.max(y))
        outs.append((y, values))
    moff = jnp.max(jnp.stack(maxes))
    exps_sum = jnp.full((n, hidden), 1e-16, jnp.float32)
    for y, values in outs:
        exps_sum = exps_sum.at[values].add(jnp.exp(8.0 * (y - moff)))
    max_msg = 0.125 * jnp.log(exps_sum) + moff
    cat = jnp.concatenate([max_msg, node_states], axis=1)
    h = jnp.maximum(cat @ upd_params["w1"] + upd_params["b1"], 0.0)
    return h @ upd_params["w2"] + upd_params["b2"]


def reference_forward_quantized(node_states, relation_values, relations, rel_params,
                                upd_params):
    """Same math, with the kernel's bf16 MXU-operand quantization (f32 accumulation),
    including bf16-quantized exps on the scatter path."""
    bf16 = jnp.bfloat16
    n, hidden = node_states.shape
    node_b = node_states.astype(bf16)

    def dot(a, b):
        return jnp.dot(a.astype(bf16), b.astype(bf16), preferred_element_type=jnp.float32)

    outs, maxes = [], []
    for rel_id, arity in relations:
        p = rel_params[rel_id]
        if p is None or rel_id not in relation_values:
            continue
        values = relation_values[rel_id]
        x = node_b[values].reshape(-1, arity * hidden)
        h = jnp.maximum(dot(x, p["w1"]) + p["b1"], 0.0)
        y = (dot(h, p["w2"]) + p["b2"]).reshape(-1, hidden)
        maxes.append(jnp.max(y))
        outs.append((y, values))
    moff = jnp.max(jnp.stack(maxes))
    exps_sum = jnp.full((n, hidden), 1e-16, jnp.float32)
    for y, values in outs:
        exps = jnp.exp(8.0 * (y - moff)).astype(bf16).astype(jnp.float32)
        exps_sum = exps_sum.at[values].add(exps)
    max_msg = 0.125 * jnp.log(exps_sum) + moff
    cat = jnp.concatenate([max_msg, node_states], axis=1)
    h = jnp.maximum(dot(cat, upd_params["w1"]) + upd_params["b1"], 0.0)
    return dot(h, upd_params["w2"]) + upd_params["b2"]


# ---------------------------------------------------------------------------
# Deterministic parameter init (nn.Linear shapes, stored as [in, out] = W^T)
# ---------------------------------------------------------------------------
def init_params(key, relations, hidden):
    keys = jax.random.split(key, len(relations) + 1)
    rel_params = {}
    for (rel_id, arity), k in zip(relations, keys[:-1]):
        d = arity * hidden
        if d == 0:
            rel_params[rel_id] = None
            continue
        k1, k2, k3, k4 = jax.random.split(k, 4)
        s = 1.0 / jnp.sqrt(d)
        rel_params[rel_id] = dict(
            w1=jax.random.uniform(k1, (d, d), jnp.float32, -s, s),
            b1=jax.random.uniform(k2, (1, d), jnp.float32, -s, s),
            w2=jax.random.uniform(k3, (d, d), jnp.float32, -s, s),
            b2=jax.random.uniform(k4, (1, d), jnp.float32, -s, s),
        )
    ku = jax.random.split(keys[-1], 4)
    s = 1.0 / jnp.sqrt(2 * hidden)
    upd_params = dict(
        w1=jax.random.uniform(ku[0], (2 * hidden, 2 * hidden), jnp.float32, -s, s),
        b1=jax.random.uniform(ku[1], (1, 2 * hidden), jnp.float32, -s, s),
        w2=jax.random.uniform(ku[2], (2 * hidden, hidden), jnp.float32, -s, s),
        b2=jax.random.uniform(ku[3], (1, hidden), jnp.float32, -s, s),
    )
    return rel_params, upd_params


if __name__ == "__main__":
    key = jax.random.PRNGKey(0)
    hidden = 32
    num_nodes = 16
    # relations: list of (relation_id, arity)  -- the int (non-PDDL) code path
    relations = [(0, 1), (1, 2)]

    k_ns, k_p, k_r0, k_r1 = jax.random.split(key, 4)
    node_states = jax.random.normal(k_ns, (num_nodes, hidden), jnp.float32)
    rel_params, upd_params = init_params(k_p, relations, hidden)
    rel_groups, upd_dev = pack_params(rel_params, upd_params, relations, hidden)

    # relation 0 (arity 1): 8 ground atoms -> 8 flat node indices
    # relation 1 (arity 2): 6 ground atoms -> 12 flat node indices
    relation_values = {
        0: jax.random.randint(k_r0, (8,), 0, num_nodes, jnp.int32),
        1: jax.random.randint(k_r1, (12,), 0, num_nodes, jnp.int32),
    }

    out = forward(node_states, relation_values, relations, rel_groups, upd_dev)
    out = jax.block_until_ready(out)

    ref_q = reference_forward_quantized(node_states, relation_values, relations,
                                        rel_params, upd_params)
    ref_f32 = reference_forward(node_states, relation_values, relations,
                                rel_params, upd_params)

    assert out.shape == (num_nodes, hidden) and out.dtype == jnp.float32
    # tight check against a reference that uses the kernel's bf16-MXU-operand numerics
    if not bool(jnp.allclose(out, ref_q, rtol=1e-2, atol=1e-2)):
        raise AssertionError("Pallas output does not match bf16-matmul reference")
    # loose check against the pure-fp32 PyTorch-semantics reference (bf16 quantization noise)
    if not bool(jnp.allclose(out, ref_f32, rtol=1e-1, atol=1e-1)):
        raise AssertionError("Pallas output drifted too far from the fp32 reference")
    print("KERNEL_OK")
</pallas_src>

<mosaic_0001>
module attributes {stable_mosaic.version = 11 : i64} {
  func.func @_fused_group_kernel(%arg0: i32, %arg1: memref<1xi32, #tpu.memory_space<smem>>, %arg2: memref<1xi32, #tpu.memory_space<smem>>, %arg3: memref<128x128xbf16, #tpu.memory_space<vmem>>, %arg4: memref<1x128xi32, #tpu.memory_space<vmem>>, %arg5: memref<1x128x128xbf16, #tpu.memory_space<vmem>>, %arg6: memref<1x1x128xf32, #tpu.memory_space<vmem>>, %arg7: memref<1x128x128xbf16, #tpu.memory_space<vmem>>, %arg8: memref<1x1x128xf32, #tpu.memory_space<vmem>>, %arg9: memref<24x128xf32, #tpu.memory_space<vmem>>, %arg10: memref<1x1xf32, #tpu.memory_space<vmem>>, %arg11: memref<24x128xf32, #tpu.memory_space<vmem>>, %arg12: memref<1x1xf32, #tpu.memory_space<vmem>>, %arg13: memref<1x1xf32, #tpu.memory_space<vmem>>) attributes {dimension_semantics = [#tpu.dimension_semantics<arbitrary>], iteration_bounds = array<i64: 1>, scalar_prefetch = 2 : i64, scratch_operands = 1 : i64, tpu.core_type = #tpu.core_type<tc>, window_params = [{transform_indices = @transform_0, window_bounds = array<i64: 128, 128>}, {transform_indices = @transform_1, window_bounds = array<i64: 1, 128>}, {transform_indices = @transform_2, window_bounds = array<i64: 1, 128, 128>}, {transform_indices = @transform_3, window_bounds = array<i64: 1, 1, 128>}, {transform_indices = @transform_4, window_bounds = array<i64: 1, 128, 128>}, {transform_indices = @transform_5, window_bounds = array<i64: 1, 1, 128>}, {pipeline_mode = #tpu.pipeline_mode<synchronous>, transform_indices = @transform_6, window_bounds = array<i64: 24, 128>}, {pipeline_mode = #tpu.pipeline_mode<synchronous>, transform_indices = @transform_7, window_bounds = array<i64: 1, 1>}, {pipeline_mode = #tpu.pipeline_mode<synchronous>, transform_indices = @transform_8, window_bounds = array<i64: 24, 128>}, {pipeline_mode = #tpu.pipeline_mode<synchronous>, transform_indices = @transform_9, window_bounds = array<i64: 1, 1>}]} {
    %c0_i32 = arith.constant 0 : i32
    %0 = arith.cmpi eq, %arg0, %c0_i32 : i32
    %1 = arith.extui %0 : i1 to i32
    %c0_i32_0 = arith.constant 0 : i32
    %2 = arith.cmpi ne, %1, %c0_i32_0 : i32
    scf.if %2 {
      %c0_34 = arith.constant 0 : index
      %c0_35 = arith.constant 0 : index
      %63 = vector.load %arg9[%c0_34, %c0_35] : memref<24x128xf32, #tpu.memory_space<vmem>>, vector<24x128xf32>
      %c0_36 = arith.constant 0 : index
      %c0_37 = arith.constant 0 : index
      %64 = vector.load %arg11[%c0_36, %c0_37] : memref<24x128xf32, #tpu.memory_space<vmem>>, vector<24x128xf32>
      tpu.vector_store %arg11[%c0_36, %c0_37], %63 {strides = array<i32>} : memref<24x128xf32, #tpu.memory_space<vmem>>, vector<24x128xf32>,
      %c0_38 = arith.constant 0 : index
      %c0_39 = arith.constant 0 : index
      %65 = vector.load %arg10[%c0_38, %c0_39] : memref<1x1xf32, #tpu.memory_space<vmem>>, vector<1x1xf32>
      %c0_40 = arith.constant 0 : index
      %c0_41 = arith.constant 0 : index
      %66 = vector.load %arg13[%c0_40, %c0_41] : memref<1x1xf32, #tpu.memory_space<vmem>>, vector<1x1xf32>
      tpu.vector_store %arg13[%c0_40, %c0_41], %65 {strides = array<i32>} : memref<1x1xf32, #tpu.memory_space<vmem>>, vector<1x1xf32>,
    } else {
    }
    %c0 = arith.constant 0 : index
    %c0_1 = arith.constant 0 : index
    %3 = vector.load %arg3[%c0, %c0_1] : memref<128x128xbf16, #tpu.memory_space<vmem>>, vector<128x128xbf16>
    %c0_2 = arith.constant 0 : index
    %c0_3 = arith.constant 0 : index
    %c0_4 = arith.constant 0 : index
    %4 = vector.load %arg5[%c0_2, %c0_3, %c0_4] : memref<1x128x128xbf16, #tpu.memory_space<vmem>>, vector<1x128x128xbf16>
    %5 = vector.shape_cast %4 : vector<1x128x128xbf16> to vector<128x128xbf16>
    %cst = arith.constant dense<0.000000e+00> : vector<128x128xf32>
    %6 = tpu.matmul %3, %5, %cst {dimension_numbers = #tpu.dot_dimension_numbers<[1], [0], [0], [1], [0, 0, 1, 1], [], []>} : vector<128x128xbf16>, vector<128x128xbf16>, vector<128x128xf32> -> vector<128x128xf32>
    %c0_5 = arith.constant 0 : index
    %c0_6 = arith.constant 0 : index
    %c0_7 = arith.constant 0 : index
    %7 = vector.load %arg6[%c0_5, %c0_6, %c0_7] : memref<1x1x128xf32, #tpu.memory_space<vmem>>, vector<1x1x128xf32>
    %8 = vector.shape_cast %7 : vector<1x1x128xf32> to vector<1x128xf32>
    %9 = vector.broadcast %8 : vector<1x128xf32> to vector<128x128xf32>
    %10 = arith.addf %6, %9 : vector<128x128xf32>
    %cst_8 = arith.constant 0.000000e+00 : f32
    %11 = vector.broadcast %cst_8 : f32 to vector<128x128xf32>
    %12 = arith.maximumf %10, %11 : vector<128x128xf32>
    %13 = arith.truncf %12 : vector<128x128xf32> to vector<128x128xbf16>
    %c0_9 = arith.constant 0 : index
    %c0_10 = arith.constant 0 : index
    %c0_11 = arith.constant 0 : index
    %14 = vector.load %arg7[%c0_9, %c0_10, %c0_11] : memref<1x128x128xbf16, #tpu.memory_space<vmem>>, vector<1x128x128xbf16>
    %15 = vector.shape_cast %14 : vector<1x128x128xbf16> to vector<128x128xbf16>
    %cst_12 = arith.constant dense<0.000000e+00> : vector<128x128xf32>
    %16 = tpu.matmul %13, %15, %cst_12 {dimension_numbers = #tpu.dot_dimension_numbers<[1], [0], [0], [1], [0, 0, 1, 1], [], []>} : vector<128x128xbf16>, vector<128x128xbf16>, vector<128x128xf32> -> vector<128x128xf32>
    %c0_13 = arith.constant 0 : index
    %c0_14 = arith.constant 0 : index
    %c0_15 = arith.constant 0 : index
    %17 = vector.load %arg8[%c0_13, %c0_14, %c0_15] : memref<1x1x128xf32, #tpu.memory_space<vmem>>, vector<1x1x128xf32>
    %18 = vector.shape_cast %17 : vector<1x1x128xf32> to vector<1x128xf32>
    %19 = vector.broadcast %18 : vector<1x128xf32> to vector<128x128xf32>
    %20 = arith.addf %16, %19 : vector<128x128xf32>
    %21 = arith.index_cast %arg0 : i32 to index
    %22 = memref.load %arg2[%21] : memref<1xi32, #tpu.memory_space<smem>>
    %23 = tpu.iota {dimensions = array<i32: 0>} : vector<128x1xi32>
    %24 = vector.broadcast %22 : i32 to vector<128x1xi32>
    %25 = arith.cmpi slt, %23, %24 : vector<128x1xi32>
    %cst_16 = arith.constant -1.000000e+09 : f32
    %26 = vector.shape_cast %25 : vector<128x1xi1> to vector<128x1xi1>
    %27 = vector.broadcast %26 : vector<128x1xi1> to vector<128x128xi1>
    %28 = vector.broadcast %cst_16 : f32 to vector<128x128xf32>
    %29 = arith.select %27, %20, %28 : vector<128x128xi1>, vector<128x128xf32>
    %cst_17 = arith.constant dense<0xFF800000> : vector<128xf32>
    %30 = vector.multi_reduction <maximumf>, %29, %cst_17 [1] : vector<128x128xf32> to vector<128xf32>
    %31 = vector.shape_cast %30 : vector<128xf32> to vector<128x1xf32>
    %cst_18 = arith.constant dense<0xFF800000> : vector<1xf32>
    %32 = vector.multi_reduction <maximumf>, %31, %cst_18 [0] : vector<128x1xf32> to vector<1xf32>
    %33 = vector.shape_cast %32 : vector<1xf32> to vector<1x1xf32>
    %c0_19 = arith.constant 0 : index
    %c0_20 = arith.constant 0 : index
    %34 = vector.load %arg13[%c0_19, %c0_20] : memref<1x1xf32, #tpu.memory_space<vmem>>, vector<1x1xf32>
    %35 = arith.maximumf %34, %33 : vector<1x1xf32>
    %c0_21 = arith.constant 0 : index
    %c0_22 = arith.constant 0 : index
    %36 = vector.load %arg13[%c0_21, %c0_22] : memref<1x1xf32, #tpu.memory_space<vmem>>, vector<1x1xf32>
    tpu.vector_store %arg13[%c0_21, %c0_22], %35 {strides = array<i32>} : memref<1x1xf32, #tpu.memory_space<vmem>>, vector<1x1xf32>,
    %37 = vector.broadcast %35 : vector<1x1xf32> to vector<128x128xf32>
    %38 = arith.subf %29, %37 : vector<128x128xf32>
    %cst_23 = arith.constant 8.000000e+00 : f32
    %39 = vector.broadcast %cst_23 : f32 to vector<128x128xf32>
    %40 = arith.mulf %39, %38 : vector<128x128xf32>
    %41 = math.exp %40 : vector<128x128xf32>
    %42 = arith.truncf %41 : vector<128x128xf32> to vector<128x128xbf16>
    %43 = tpu.iota {dimensions = array<i32: 0>} : vector<24x128xi32>
    %c0_24 = arith.constant 0 : index
    %c0_25 = arith.constant 0 : index
    %44 = vector.load %arg4[%c0_24, %c0_25] : memref<1x128xi32, #tpu.memory_space<vmem>>, vector<1x128xi32>
    %45 = vector.broadcast %44 : vector<1x128xi32> to vector<24x128xi32>
    %46 = arith.cmpi eq, %43, %45 : vector<24x128xi32>
    %47 = arith.extui %46 : vector<24x128xi1> to vector<24x128xi32>
    %48 = arith.sitofp %47 : vector<24x128xi32> to vector<24x128xf32>
    %49 = arith.truncf %48 : vector<24x128xf32> to vector<24x128xbf16>
    %cst_26 = arith.constant dense<0.000000e+00> : vector<24x128xf32>
    %50 = tpu.matmul %49, %42, %cst_26 {dimension_numbers = #tpu.dot_dimension_numbers<[1], [0], [0], [1], [0, 0, 1, 1], [], []>} : vector<24x128xbf16>, vector<128x128xbf16>, vector<24x128xf32> -> vector<24x128xf32>
    %c0_27 = arith.constant 0 : index
    %c0_28 = arith.constant 0 : index
    %51 = vector.load %arg11[%c0_27, %c0_28] : memref<24x128xf32, #tpu.memory_space<vmem>>, vector<24x128xf32>
    %52 = arith.subf %34, %35 : vector<1x1xf32>
    %cst_29 = arith.constant 8.000000e+00 : f32
    %53 = vector.broadcast %cst_29 : f32 to vector<1x1xf32>
    %54 = arith.mulf %53, %52 : vector<1x1xf32>
    %55 = math.exp %54 : vector<1x1xf32>
    %56 = vector.broadcast %55 : vector<1x1xf32> to vector<24x128xf32>
    %57 = arith.mulf %51, %56 : vector<24x128xf32>
    %58 = arith.addf %57, %50 : vector<24x128xf32>
    %c0_30 = arith.constant 0 : index
    %c0_31 = arith.constant 0 : index
    %59 = vector.load %arg11[%c0_30, %c0_31] : memref<24x128xf32, #tpu.memory_space<vmem>>, vector<24x128xf32>
    tpu.vector_store %arg11[%c0_30, %c0_31], %58 {strides = array<i32>} : memref<24x128xf32, #tpu.memory_space<vmem>>, vector<24x128xf32>,
    %c0_i32_32 = arith.constant 0 : i32
    %60 = arith.cmpi eq, %arg0, %c0_i32_32 : i32
    %61 = arith.extui %60 : i1 to i32
    %c0_i32_33 = arith.constant 0 : i32
    %62 = arith.cmpi ne, %61, %c0_i32_33 : i32
    scf.if %62 {
      %c0_34 = arith.constant 0 : index
      %c0_35 = arith.constant 0 : index
      %63 = vector.load %arg13[%c0_34, %c0_35] : memref<1x1xf32, #tpu.memory_space<vmem>>, vector<1x1xf32>
      %c0_36 = arith.constant 0 : index
      %c0_37 = arith.constant 0 : index
      %64 = vector.load %arg12[%c0_36, %c0_37] : memref<1x1xf32, #tpu.memory_space<vmem>>, vector<1x1xf32>
      tpu.vector_store %arg12[%c0_36, %c0_37], %63 {strides = array<i32>} : memref<1x1xf32, #tpu.memory_space<vmem>>, vector<1x1xf32>,
    } else {
    }
    return
  }
  func.func @transform_0(%arg0: i32, %arg1: memref<1xi32, #tpu.memory_space<smem>>, %arg2: memref<1xi32, #tpu.memory_space<smem>>) -> (i32, i32) {
    %c0_i32 = arith.constant 0 : i32
    %c0_i32_0 = arith.constant 0 : i32
    return %arg0, %c0_i32 : i32, i32
  }
  func.func @transform_1(%arg0: i32, %arg1: memref<1xi32, #tpu.memory_space<smem>>, %arg2: memref<1xi32, #tpu.memory_space<smem>>) -> (i32, i32) {
    %c0_i32 = arith.constant 0 : i32
    %c0_i32_0 = arith.constant 0 : i32
    return %c0_i32, %arg0 : i32, i32
  }
  func.func @transform_2(%arg0: i32, %arg1: memref<1xi32, #tpu.memory_space<smem>>, %arg2: memref<1xi32, #tpu.memory_space<smem>>) -> (i32, i32, i32) {
    %0 = arith.index_cast %arg0 : i32 to index
    %1 = memref.load %arg1[%0] : memref<1xi32, #tpu.memory_space<smem>>
    %c0_i32 = arith.constant 0 : i32
    %c0_i32_0 = arith.constant 0 : i32
    %c0_i32_1 = arith.constant 0 : i32
    return %1, %c0_i32, %c0_i32_0 : i32, i32, i32
  }
  func.func @transform_3(%arg0: i32, %arg1: memref<1xi32, #tpu.memory_space<smem>>, %arg2: memref<1xi32, #tpu.memory_space<smem>>) -> (i32, i32, i32) {
    %0 = arith.index_cast %arg0 : i32 to index
    %1 = memref.load %arg1[%0] : memref<1xi32, #tpu.memory_space<smem>>
    %c0_i32 = arith.constant 0 : i32
    %c0_i32_0 = arith.constant 0 : i32
    %c0_i32_1 = arith.constant 0 : i32
    return %1, %c0_i32, %c0_i32_0 : i32, i32, i32
  }
  func.func @transform_4(%arg0: i32, %arg1: memref<1xi32, #tpu.memory_space<smem>>, %arg2: memref<1xi32, #tpu.memory_space<smem>>) -> (i32, i32, i32) {
    %0 = arith.index_cast %arg0 : i32 to index
    %1 = memref.load %arg1[%0] : memref<1xi32, #tpu.memory_space<smem>>
    %c0_i32 = arith.constant 0 : i32
    %c0_i32_0 = arith.constant 0 : i32
    %c0_i32_1 = arith.constant 0 : i32
    return %1, %c0_i32, %c0_i32_0 : i32, i32, i32
  }
  func.func @transform_5(%arg0: i32, %arg1: memref<1xi32, #tpu.memory_space<smem>>, %arg2: memref<1xi32, #tpu.memory_space<smem>>) -> (i32, i32, i32) {
    %0 = arith.index_cast %arg0 : i32 to index
    %1 = memref.load %arg1[%0] : memref<1xi32, #tpu.memory_space<smem>>
    %c0_i32 = arith.constant 0 : i32
    %c0_i32_0 = arith.constant 0 : i32
    %c0_i32_1 = arith.constant 0 : i32
    return %1, %c0_i32, %c0_i32_0 : i32, i32, i32
  }
  func.func @transform_6(%arg0: i32, %arg1: memref<1xi32, #tpu.memory_space<smem>>, %arg2: memref<1xi32, #tpu.memory_space<smem>>) -> (i32, i32) {
    %c0_i32 = arith.constant 0 : i32
    %c0_i32_0 = arith.constant 0 : i32
    %c0_i32_1 = arith.constant 0 : i32
    return %c0_i32, %c0_i32_0 : i32, i32
  }
  func.func @transform_7(%arg0: i32, %arg1: memref<1xi32, #tpu.memory_space<smem>>, %arg2: memref<1xi32, #tpu.memory_space<smem>>) -> (i32, i32) {
    %c0_i32 = arith.constant 0 : i32
    %c0_i32_0 = arith.constant 0 : i32
    %c0_i32_1 = arith.constant 0 : i32
    return %c0_i32, %c0_i32_0 : i32, i32
  }
  func.func @transform_8(%arg0: i32, %arg1: memref<1xi32, #tpu.memory_space<smem>>, %arg2: memref<1xi32, #tpu.memory_space<smem>>) -> (i32, i32) {
    %c0_i32 = arith.constant 0 : i32
    %c0_i32_0 = arith.constant 0 : i32
    %c0_i32_1 = arith.constant 0 : i32
    return %c0_i32, %c0_i32_0 : i32, i32
  }
  func.func @transform_9(%arg0: i32, %arg1: memref<1xi32, #tpu.memory_space<smem>>, %arg2: memref<1xi32, #tpu.memory_space<smem>>) -> (i32, i32) {
    %c0_i32 = arith.constant 0 : i32
    %c0_i32_0 = arith.constant 0 : i32
    %c0_i32_1 = arith.constant 0 : i32
    return %c0_i32, %c0_i32_0 : i32, i32
  }
}

</mosaic_0001>

<llo_original>
// kernel: tpu_custom_call.1
$region0: #{tpu_custom_call.1}
  #allocation0 [shape = 'u32[]', space=smem, size = 0x4, offset = 0x4, fixed_abs, tag = 'smem constant byte address 0x4 - core index']
  #allocation1 [shape = 'u32[72,128]{1,0:T(1,128)}', space=vmem, size = 0x9000, scoped, tag = 'internal scratch']
  #allocation2 [shape = 'f32[1,1]{1,0:T(1,128)}', space=vmem, size = 0x200, scoped, tag = 'scratch operand']
  #allocation3 [shape = 's32[1]{0}', space=sflag, size = 0x4, scoped, tag = 'scoped memory for tpu_custom_call.1']
  #allocation4 [shape = 's32[1]{0:T(128)S(6)}', space=smem, size = 0x200, scoped, tag = 'prefetched SMEM operand 0']
  #allocation5 [shape = 's32[1]{0:T(128)S(6)}', space=smem, size = 0x200, scoped, tag = 'prefetched SMEM operand 1']
  #allocation6 [shape = 'f32[1,1]{1,0:T(1,128)S(1)}', space=vmem, size = 0x200, scoped, tag = 'scoped memory for tpu_custom_call.1']
  %s0 = inlined_call_operand.<no memory space> [shape: s32[1], index: 0, kind: input, shape index: {}]
  %s1 = inlined_call_operand.<no memory space> [shape: s32[1], index: 1, kind: input, shape index: {}]
  %s2 = inlined_call_operand.hbm [shape: bf16[128,128], index: 2, kind: input, shape index: {}]
  %s3 = inlined_call_operand.vmem [shape: s32[1,128], index: 3, kind: input, shape index: {}]
  %s4 = inlined_call_operand.hbm [shape: bf16[1,128,128], index: 4, kind: input, shape index: {}]
  %s5 = inlined_call_operand.vmem [shape: f32[1,1,128], index: 5, kind: input, shape index: {}]
  %s6 = inlined_call_operand.hbm [shape: bf16[1,128,128], index: 6, kind: input, shape index: {}]
  %s7 = inlined_call_operand.vmem [shape: f32[1,1,128], index: 7, kind: input, shape index: {}]
  %s8 = inlined_call_operand.hbm [shape: f32[24,128], index: 8, kind: input, shape index: {}, may-alias: {8,10}]
  %s9 = inlined_call_operand.<no memory space> [shape: f32[1,1], index: 9, kind: input, shape index: {}]
  %s10 = inlined_call_operand.hbm [shape: f32[24,128], index: 10, kind: output, shape index: {0}, may-alias: {8,10}]
  %s11 = inlined_call_operand.hbm [shape: f32[1,1], index: 11, kind: output, shape index: {1}]
  %12 = xla_tuple %s10, %s11
  %s13 = sld [smem:[#allocation0]]
  $region74: #{tpu_custom_call.1} parent=0
    _
  %s15 = ssub.s32 1, %s13
  %s16 = scalar_select 0, %s15, %s13
  %17 = sst [smem:[#allocation4]] %s0
  %18 = sst [smem:[#allocation5]] %s1
  %v19 = vstv %s9
  %20 = vst [vmem:[#allocation6] sm:$0x1] %v19
  $region1: #{tpu_custom_call.1} parent=0
    #allocation7 [shape = 'u8[32768]{0}', space=vmem, size = 0x8000, scoped, tag = 'input window, operand 2, single buffered']
    #allocation8 [shape = 's32[1]{0}', space=sflag, size = 0x4, scoped, tag = 'scoped memory for tpu_custom_call.1']
    #allocation9 [shape = 's32[1]{0}', space=sflag, size = 0x4, scoped, tag = 'scoped memory for tpu_custom_call.1']
    #allocation10 [shape = 'u8[32768]{0}', space=vmem, size = 0x8000, scoped, tag = 'input window, operand 4, single buffered']
    #allocation11 [shape = 's32[1]{0}', space=sflag, size = 0x4, scoped, tag = 'scoped memory for tpu_custom_call.1']
    #allocation12 [shape = 'u8[32768]{0}', space=vmem, size = 0x8000, scoped, tag = 'input window, operand 6, single buffered']
    #allocation13 [shape = 'u8[12288]{0}', space=vmem, size = 0x3000, scoped, tag = 'input window, operand 8, single buffered']
    #allocation14 [shape = 's32[1]{0}', space=sflag, size = 0x4, scoped, tag = 'scoped memory for tpu_custom_call.1']
    #allocation15 [shape = 'u8[12288]{0}', space=vmem, size = 0x3000, scoped, tag = 'output window, operand 0, single buffered']
    #allocation16 [shape = 'u8[512]{0}', space=vmem, size = 0x400, scoped, tag = 'output window, operand 1, single buffered']
    #allocation17 [shape = 's32[1]{0}', space=sflag, size = 0x4, scoped, tag = 'scoped memory for tpu_custom_call.1']
    %21 = vsyncpa [#allocation8], 0
    %22 = vsyncpa [#allocation11], 0
    %23 = vsyncpa [#allocation14], 0
    %24 = vsyncpa [#allocation9], 0
    %25 = vsyncpa [#allocation17], 0
    // Predicated region
    $region2: #{tpu_custom_call.1} parent=1 // pred_check
      _
    $region3: #{tpu_custom_call.1} parent=1 // pred_check_branch
      %27 = sbr.rel (0) target = $region5
    $region4: #{tpu_custom_call.1} parent=1 // pred_region
      %29 = vsyncadd [#allocation8], 0
      %s30 = sshll.u32 %s2, 4
      %s31 = int_to_ptr.hbm [resolvable:$true] %s30
      %s32 = sshll.u32 [#allocation7], 4
      %s33 = int_to_ptr.vmem [resolvable:$true] %s32
      %38 = dma.hbm_to_vmem [thread:$0]  %s31, 1024, %s33, [#allocation8], 64, 64, 4
    $region5: #{tpu_custom_call.1} parent=1 // pred_fallthru
      _
    // Predicated region
    $region6: #{tpu_custom_call.1} parent=1 // pred_check
      _
    $region7: #{tpu_custom_call.1} parent=1 // pred_check_branch
      %40 = sbr.rel (0) target = $region9
    $region8: #{tpu_custom_call.1} parent=1 // pred_region
      _
    $region9: #{tpu_custom_call.1} parent=1 // pred_fallthru
      _
    // Predicated region
    $region10: #{tpu_custom_call.1} parent=1 // pred_check
      _
    $region11: #{tpu_custom_call.1} parent=1 // pred_check_branch
      %42 = sbr.rel (0) target = $region13
    $region12: #{tpu_custom_call.1} parent=1 // pred_region
      %s43 = sld [smem:[#allocation4]]
      %45 = vsyncadd [#allocation11], 0
      %s46 = smul.addr %s43, 16
      %s47 = smul.addr %s46, 4
      %s48 = scalar_lea.hbm %s4, %s47
      %s49 = sshll.u32 %s48, 4
      %s50 = int_to_ptr.hbm [resolvable:$true] %s49
      %s51 = sshll.u32 [#allocation10], 4
      %s52 = int_to_ptr.vmem [resolvable:$true] %s51
      %57 = dma.hbm_to_vmem [thread:$0]  %s50, 1024, %s52, [#allocation11], 64, 64, 4
    $region13: #{tpu_custom_call.1} parent=1 // pred_fallthru
      _
    // Predicated region
    $region14: #{tpu_custom_call.1} parent=1 // pred_check
      _
    $region15: #{tpu_custom_call.1} parent=1 // pred_check_branch
      %59 = sbr.rel (0) target = $region17
    $region16: #{tpu_custom_call.1} parent=1 // pred_region
      %s60 = sld [smem:[#allocation4]]
      %p61 = scmp.lt.s32.totalorder %s60, 0
      %s62 = scalar_select %p61, %s60, 0
      %s63 = scalar_lea.vmem %s5, %s62
      %s64 = sld [smem:[#allocation4]]
    $region17: #{tpu_custom_call.1} parent=1 // pred_fallthru
      _
    // Predicated region
    $region18: #{tpu_custom_call.1} parent=1 // pred_check
      _
    $region19: #{tpu_custom_call.1} parent=1 // pred_check_branch
      %66 = sbr.rel (0) target = $region21
    $region20: #{tpu_custom_call.1} parent=1 // pred_region
      %s67 = sld [smem:[#allocation4]]
      %69 = vsyncadd [#allocation11], 0
      %s70 = smul.addr %s67, 16
      %s71 = smul.addr %s70, 4
      %s72 = scalar_lea.hbm %s6, %s71
      %s73 = sshll.u32 %s72, 4
      %s74 = int_to_ptr.hbm [resolvable:$true] %s73
      %s75 = sshll.u32 [#allocation12], 4
      %s76 = int_to_ptr.vmem [resolvable:$true] %s75
      %81 = dma.hbm_to_vmem [thread:$0]  %s74, 1024, %s76, [#allocation11], 64, 64, 4
    $region21: #{tpu_custom_call.1} parent=1 // pred_fallthru
      _
    // Predicated region
    $region22: #{tpu_custom_call.1} parent=1 // pred_check
      _
    $region23: #{tpu_custom_call.1} parent=1 // pred_check_branch
      %83 = sbr.rel (0) target = $region25
    $region24: #{tpu_custom_call.1} parent=1 // pred_region
      %s84 = sld [smem:[#allocation4]]
      %p85 = scmp.lt.s32.totalorder %s84, 0
      %s86 = scalar_select %p85, %s84, 0
      %s87 = scalar_lea.vmem %s7, %s86
      %s88 = sld [smem:[#allocation4]]
    $region25: #{tpu_custom_call.1} parent=1 // pred_fallthru
      _
    // Predicated region
    $region26: #{tpu_custom_call.1} parent=1 // pred_check
      _
    $region27: #{tpu_custom_call.1} parent=1 // pred_check_branch
      %90 = sbr.rel (0) target = $region29
    $region28: #{tpu_custom_call.1} parent=1 // pred_region
      %92 = vsyncadd [#allocation14], 0
      %s93 = sshll.u32 %s8, 4
      %s94 = int_to_ptr.hbm [resolvable:$true] %s93
      %s95 = sshll.u32 [#allocation13], 4
      %s96 = int_to_ptr.vmem [resolvable:$true] %s95
      %101 = dma.hbm_to_vmem [thread:$0]  %s94, 384, %s96, [#allocation14], 128, 128, 8
    $region29: #{tpu_custom_call.1} parent=1 // pred_fallthru
      _
    // Predicated region
    $region30: #{tpu_custom_call.1} parent=1 // pred_check
      _
    $region31: #{tpu_custom_call.1} parent=1 // pred_check_branch
      %103 = sbr.rel (0) target = $region33
    $region32: #{tpu_custom_call.1} parent=1 // pred_region
      _
    $region33: #{tpu_custom_call.1} parent=1 // pred_fallthru
      _
    // Predicated region
    $region34: #{tpu_custom_call.1} parent=1 // pred_check
      _
    $region35: #{tpu_custom_call.1} parent=1 // pred_check_branch
      %105 = sbr.rel (0) target = $region37
    $region36: #{tpu_custom_call.1} parent=1 // pred_region
      %107 = dma.done [#allocation8], 1024
    $region37: #{tpu_custom_call.1} parent=1 // pred_fallthru
      _
    // Predicated region
    $region38: #{tpu_custom_call.1} parent=1 // pred_check
      _
    $region39: #{tpu_custom_call.1} parent=1 // pred_check_branch
      %109 = sbr.rel (0) target = $region41
    $region40: #{tpu_custom_call.1} parent=1 // pred_region
      %111 = dma.done [#allocation11], 1024
    $region41: #{tpu_custom_call.1} parent=1 // pred_fallthru
      _
    // Predicated region
    $region42: #{tpu_custom_call.1} parent=1 // pred_check
      _
    $region43: #{tpu_custom_call.1} parent=1 // pred_check_branch
      %113 = sbr.rel (0) target = $region45
    $region44: #{tpu_custom_call.1} parent=1 // pred_region
      %115 = dma.done [#allocation11], 1024
    $region45: #{tpu_custom_call.1} parent=1 // pred_fallthru
      _
    // Predicated region
    $region46: #{tpu_custom_call.1} parent=1 // pred_check
      _
    $region47: #{tpu_custom_call.1} parent=1 // pred_check_branch
      %117 = sbr.rel (0) target = $region49
    $region48: #{tpu_custom_call.1} parent=1 // pred_region
      %119 = dma.done [#allocation14], 384
    $region49: #{tpu_custom_call.1} parent=1 // pred_fallthru
      _
    %s120 = sld [smem:[#allocation4]]
    %p121 = scmp.lt.s32.totalorder %s120, 0
    %s122 = scalar_select %p121, %s120, 0
    %s123 = scalar_lea.vmem %s5, %s122
    %s124 = sld [smem:[#allocation4]]
    %p125 = scmp.lt.s32.totalorder %s124, 0
    %s126 = scalar_select %p125, %s124, 0
    %s127 = scalar_lea.vmem %s7, %s126
    %s128 = sld [smem:[#allocation4]]
    %s129 = sld [smem:[#allocation4]]
    %p130 = scmp.lt.s32.totalorder %s129, 0
    %s131 = scalar_select %p130, %s129, 0
    %s132 = scalar_lea.vmem %s5, %s131
    %s133 = sld [smem:[#allocation4]]
    %s134 = sld [smem:[#allocation4]]
    %s135 = sld [smem:[#allocation4]]
    %p136 = scmp.lt.s32.totalorder %s135, 0
    %s137 = scalar_select %p136, %s135, 0
    %s138 = scalar_lea.vmem %s7, %s137
    %s139 = sld [smem:[#allocation4]]
    %p140 = scmp.eq.s32.totalorder 0, 0
    // Predicated region
    $region50: #{tpu_custom_call.1} parent=1 // pred_check
      %p141 = pneg %p140
    $region51: #{tpu_custom_call.1} parent=1 // pred_check_branch
      %143 = sbr.rel (%p141) target = $region53
    $region52: #{tpu_custom_call.1} parent=1 // pred_region
      %v144 = vld [vmem:[#allocation13] sm:$0xff]
      %v145 = vld [vmem:[#allocation13 + $0x8] sm:$0xff]
      %v146 = vld [vmem:[#allocation13 + $0x10] sm:$0xff]
      %147 = vst [vmem:[#allocation15] sm:$0xff] %v144
      %148 = vst [vmem:[#allocation15 + $0x8] sm:$0xff] %v145
      %149 = vst [vmem:[#allocation15 + $0x10] sm:$0xff] %v146
      %v150 = vld [vmem:[#allocation6] sm:$0x1]
      %vm151 = vcmask 0
      %152 = vst.msk [vmem:[#allocation2] sm:$0x1] %vm151, %v150
    $region53: #{tpu_custom_call.1} parent=1 // pred_fallthru
      _
    %v153 = vld [vmem:[#allocation7] sm:$0xf]
    %v154 = vld [vmem:[#allocation7 + $0x4] sm:$0xf]
    %v155 = vld [vmem:[#allocation7 + $0x8] sm:$0xf]
    %v156 = vld [vmem:[#allocation7 + $0xc] sm:$0xf]
    %v157 = vld [vmem:[#allocation7 + $0x10] sm:$0xf]
    %v158 = vld [vmem:[#allocation7 + $0x14] sm:$0xf]
    %v159 = vld [vmem:[#allocation7 + $0x18] sm:$0xf]
    %v160 = vld [vmem:[#allocation7 + $0x1c] sm:$0xf]
    %v161 = vld [vmem:[#allocation7 + $0x20] sm:$0xf]
    %v162 = vld [vmem:[#allocation7 + $0x24] sm:$0xf]
    %v163 = vld [vmem:[#allocation7 + $0x28] sm:$0xf]
    %v164 = vld [vmem:[#allocation7 + $0x2c] sm:$0xf]
    %v165 = vld [vmem:[#allocation7 + $0x30] sm:$0xf]
    %v166 = vld [vmem:[#allocation7 + $0x34] sm:$0xf]
    %v167 = vld [vmem:[#allocation7 + $0x38] sm:$0xf]
    %v168 = vld [vmem:[#allocation7 + $0x3c] sm:$0xf]
    %v169 = vld [vmem:[#allocation10] sm:$0xf]
    %v170 = vld [vmem:[#allocation10 + $0x4] sm:$0xf]
    %v171 = vld [vmem:[#allocation10 + $0x8] sm:$0xf]
    %v172 = vld [vmem:[#allocation10 + $0xc] sm:$0xf]
    %v173 = vld [vmem:[#allocation10 + $0x10] sm:$0xf]
    %v174 = vld [vmem:[#allocation10 + $0x14] sm:$0xf]
    %v175 = vld [vmem:[#allocation10 + $0x18] sm:$0xf]
    %v176 = vld [vmem:[#allocation10 + $0x1c] sm:$0xf]
    %v177 = vld [vmem:[#allocation10 + $0x20] sm:$0xf]
    %v178 = vld [vmem:[#allocation10 + $0x24] sm:$0xf]
    %v179 = vld [vmem:[#allocation10 + $0x28] sm:$0xf]
    %v180 = vld [vmem:[#allocation10 + $0x2c] sm:$0xf]
    %v181 = vld [vmem:[#allocation10 + $0x30] sm:$0xf]
    %v182 = vld [vmem:[#allocation10 + $0x34] sm:$0xf]
    %v183 = vld [vmem:[#allocation10 + $0x38] sm:$0xf]
    %v184 = vld [vmem:[#allocation10 + $0x3c] sm:$0xf]
    %v185 = vld [vmem:[%s132] sm:$0x1]
    %v187 = vperm.slane %v185, 0
    %v205 = vunpack.c.l.b16 %v153
    %v206 = vunpack.c.l.b16 %v154
    %v207 = vunpack.c.l.b16 %v155
    %v208 = vunpack.c.l.b16 %v156
    %v209 = vunpack.c.l.b16 %v157
    %v210 = vunpack.c.l.b16 %v158
    %v211 = vunpack.c.l.b16 %v159
    %v212 = vunpack.c.l.b16 %v160
    %v213 = vunpack.c.l.b16 %v161
    %v214 = vunpack.c.l.b16 %v162
    %v215 = vunpack.c.l.b16 %v163
    %v216 = vunpack.c.l.b16 %v164
    %v217 = vunpack.c.l.b16 %v165
    %v218 = vunpack.c.l.b16 %v166
    %v219 = vunpack.c.l.b16 %v167
    %v220 = vunpack.c.l.b16 %v168
    %v221 = vpack.c.b16 %v206, %v205
    %v222 = vpack.c.b16 %v208, %v207
    %v223 = vpack.c.b16 %v210, %v209
    %v224 = vpack.c.b16 %v212, %v211
    %v225 = vpack.c.b16 %v214, %v213
    %v226 = vpack.c.b16 %v216, %v215
    %v227 = vpack.c.b16 %v218, %v217
    %v228 = vpack.c.b16 %v220, %v219
    %v253 = vunpack.c.l.b16 %v169
    %v254 = vunpack.c.l.b16 %v170
    %v255 = vunpack.c.l.b16 %v171
    %v256 = vunpack.c.l.b16 %v172
    %v257 = vunpack.c.l.b16 %v173
    %v258 = vunpack.c.l.b16 %v174
    %v259 = vunpack.c.l.b16 %v175
    %v260 = vunpack.c.l.b16 %v176
    %v261 = vunpack.c.l.b16 %v177
    %v262 = vunpack.c.l.b16 %v178
    %v263 = vunpack.c.l.b16 %v179
    %v264 = vunpack.c.l.b16 %v180
    %v265 = vunpack.c.l.b16 %v181
    %v266 = vunpack.c.l.b16 %v182
    %v267 = vunpack.c.l.b16 %v183
    %v268 = vunpack.c.l.b16 %v184
    %v269 = vpack.c.b16 %v254, %v253
    %v270 = vpack.c.b16 %v256, %v255
    %v271 = vpack.c.b16 %v258, %v257
    %v272 = vpack.c.b16 %v260, %v259
    %v273 = vpack.c.b16 %v262, %v261
    %v274 = vpack.c.b16 %v264, %v263
    %v275 = vpack.c.b16 %v266, %v265
    %v276 = vpack.c.b16 %v268, %v267
    %285 = vmatpush.bf16.msra.mxu0 %v276
    %286 = vmatpush.bf16.msra.mxu0 %v275
    %287 = vmatpush.bf16.msra.mxu0 %v274
    %288 = vmatpush.bf16.msra.mxu0 %v273
    %289 = vmatpush.bf16.msra.mxu0 %v272
    %290 = vmatpush.bf16.msra.mxu0 %v271
    %291 = vmatpush.bf16.msra.mxu0 %v270
    %292 = vmatpush.bf16.msra.mxu0 %v269
    %293 = vmatmul.bf16.gmra.mxu0 %v221
    %v294 = vpop.f32.mrf.mxu0
    %v295 = vadd.f32 %v187, %v294
    %v296 = vpop.f32.mrf.mxu0
    %v297 = vadd.f32 %v187, %v296
    %298 = vmatmul.bf16.gmra.mxu0 %v222
    %v299 = vpop.f32.mrf.mxu0
    %v300 = vadd.f32 %v187, %v299
    %v301 = vpop.f32.mrf.mxu0
    %v302 = vadd.f32 %v187, %v301
    %303 = vmatmul.bf16.gmra.mxu0 %v223
    %v304 = vpop.f32.mrf.mxu0
    %v305 = vadd.f32 %v187, %v304
    %v306 = vpop.f32.mrf.mxu0
    %v307 = vadd.f32 %v187, %v306
    %308 = vmatmul.bf16.gmra.mxu0 %v224
    %v309 = vpop.f32.mrf.mxu0
    %v310 = vadd.f32 %v187, %v309
    %v311 = vpop.f32.mrf.mxu0
    %v312 = vadd.f32 %v187, %v311
    %313 = vmatmul.bf16.gmra.mxu0 %v225
    %v314 = vpop.f32.mrf.mxu0
    %v315 = vadd.f32 %v187, %v314
    %v316 = vpop.f32.mrf.mxu0
    %v317 = vadd.f32 %v187, %v316
    %318 = vmatmul.bf16.gmra.mxu0 %v226
    %v319 = vpop.f32.mrf.mxu0
    %v320 = vadd.f32 %v187, %v319
    %v321 = vpop.f32.mrf.mxu0
    %v322 = vadd.f32 %v187, %v321
    %323 = vmatmul.bf16.gmra.mxu0 %v227
    %v324 = vpop.f32.mrf.mxu0
    %v325 = vadd.f32 %v187, %v324
    %v326 = vpop.f32.mrf.mxu0
    %v327 = vadd.f32 %v187, %v326
    %328 = vmatmul.bf16.gmra.mxu0 %v228
    %v329 = vpop.f32.mrf.mxu0
    %v330 = vadd.f32 %v187, %v329
    %v331 = vpop.f32.mrf.mxu0
    %v332 = vadd.f32 %v187, %v331
    %333 = vdwg.mxu0
    %v334 = vmax.f32 %v295, 0.0
    %v335 = vmax.f32 %v297, 0.0
    %v336 = vmax.f32 %v300, 0.0
    %v337 = vmax.f32 %v302, 0.0
    %v338 = vmax.f32 %v305, 0.0
    %v339 = vmax.f32 %v307, 0.0
    %v340 = vmax.f32 %v310, 0.0
    %v341 = vmax.f32 %v312, 0.0
    %v342 = vmax.f32 %v315, 0.0
    %v343 = vmax.f32 %v317, 0.0
    %v344 = vmax.f32 %v320, 0.0
    %v345 = vmax.f32 %v322, 0.0
    %v346 = vmax.f32 %v325, 0.0
    %v347 = vmax.f32 %v327, 0.0
    %v348 = vmax.f32 %v330, 0.0
    %v349 = vmax.f32 %v332, 0.0
    %v350 = vpack.c.bf16 %v335, %v334
    %v351 = vpack.c.bf16 %v337, %v336
    %v352 = vpack.c.bf16 %v339, %v338
    %v353 = vpack.c.bf16 %v341, %v340
    %v354 = vpack.c.bf16 %v343, %v342
    %v355 = vpack.c.bf16 %v345, %v344
    %v356 = vpack.c.bf16 %v347, %v346
    %v357 = vpack.c.bf16 %v349, %v348
    %v358 = vld [vmem:[#allocation12] sm:$0xf]
    %v359 = vld [vmem:[#allocation12 + $0x4] sm:$0xf]
    %v360 = vld [vmem:[#allocation12 + $0x8] sm:$0xf]
    %v361 = vld [vmem:[#allocation12 + $0xc] sm:$0xf]
    %v362 = vld [vmem:[#allocation12 + $0x10] sm:$0xf]
    %v363 = vld [vmem:[#allocation12 + $0x14] sm:$0xf]
    %v364 = vld [vmem:[#allocation12 + $0x18] sm:$0xf]
    %v365 = vld [vmem:[#allocation12 + $0x1c] sm:$0xf]
    %v366 = vld [vmem:[#allocation12 + $0x20] sm:$0xf]
    %v367 = vld [vmem:[#allocation12 + $0x24] sm:$0xf]
    %v368 = vld [vmem:[#allocation12 + $0x28] sm:$0xf]
    %v369 = vld [vmem:[#allocation12 + $0x2c] sm:$0xf]
    %v370 = vld [vmem:[#allocation12 + $0x30] sm:$0xf]
    %v371 = vld [vmem:[#allocation12 + $0x34] sm:$0xf]
    %v372 = vld [vmem:[#allocation12 + $0x38] sm:$0xf]
    %v373 = vld [vmem:[#allocation12 + $0x3c] sm:$0xf]
    %v374 = vld [vmem:[%s138] sm:$0x1]
    %v376 = vperm.slane %v374, 0
    %v394 = vunpack.c.l.b16 %v358
    %v395 = vunpack.c.l.b16 %v359
    %v396 = vunpack.c.l.b16 %v360
    %v397 = vunpack.c.l.b16 %v361
    %v398 = vunpack.c.l.b16 %v362
    %v399 = vunpack.c.l.b16 %v363
    %v400 = vunpack.c.l.b16 %v364
    %v401 = vunpack.c.l.b16 %v365
    %v402 = vunpack.c.l.b16 %v366
    %v403 = vunpack.c.l.b16 %v367
    %v404 = vunpack.c.l.b16 %v368
    %v405 = vunpack.c.l.b16 %v369
    %v406 = vunpack.c.l.b16 %v370
    %v407 = vunpack.c.l.b16 %v371
    %v408 = vunpack.c.l.b16 %v372
    %v409 = vunpack.c.l.b16 %v373
    %v410 = vpack.c.b16 %v395, %v394
    %v411 = vpack.c.b16 %v397, %v396
    %v412 = vpack.c.b16 %v399, %v398
    %v413 = vpack.c.b16 %v401, %v400
    %v414 = vpack.c.b16 %v403, %v402
    %v415 = vpack.c.b16 %v405, %v404
    %v416 = vpack.c.b16 %v407, %v406
    %v417 = vpack.c.b16 %v409, %v408
    %426 = vmatpush.bf16.msra.mxu0 %v417
    %427 = vmatpush.bf16.msra.mxu0 %v416
    %428 = vmatpush.bf16.msra.mxu0 %v415
    %429 = vmatpush.bf16.msra.mxu0 %v414
    %430 = vmatpush.bf16.msra.mxu0 %v413
    %431 = vmatpush.bf16.msra.mxu0 %v412
    %432 = vmatpush.bf16.msra.mxu0 %v411
    %433 = vmatpush.bf16.msra.mxu0 %v410
    %434 = vmatmul.bf16.gmra.mxu0 %v350
    %v435 = vpop.f32.mrf.mxu0
    %v436 = vadd.f32 %v376, %v435
    %v437 = vpop.f32.mrf.mxu0
    %v438 = vadd.f32 %v376, %v437
    %439 = vmatmul.bf16.gmra.mxu0 %v351
    %v440 = vpop.f32.mrf.mxu0
    %v441 = vadd.f32 %v376, %v440
    %v442 = vpop.f32.mrf.mxu0
    %v443 = vadd.f32 %v376, %v442
    %444 = vmatmul.bf16.gmra.mxu0 %v352
    %v445 = vpop.f32.mrf.mxu0
    %v446 = vadd.f32 %v376, %v445
    %v447 = vpop.f32.mrf.mxu0
    %v448 = vadd.f32 %v376, %v447
    %449 = vmatmul.bf16.gmra.mxu0 %v353
    %v450 = vpop.f32.mrf.mxu0
    %v451 = vadd.f32 %v376, %v450
    %v452 = vpop.f32.mrf.mxu0
    %v453 = vadd.f32 %v376, %v452
    %454 = vmatmul.bf16.gmra.mxu0 %v354
    %v455 = vpop.f32.mrf.mxu0
    %v456 = vadd.f32 %v376, %v455
    %v457 = vpop.f32.mrf.mxu0
    %v458 = vadd.f32 %v376, %v457
    %459 = vmatmul.bf16.gmra.mxu0 %v355
    %v460 = vpop.f32.mrf.mxu0
    %v461 = vadd.f32 %v376, %v460
    %v462 = vpop.f32.mrf.mxu0
    %v463 = vadd.f32 %v376, %v462
    %464 = vmatmul.bf16.gmra.mxu0 %v356
    %v465 = vpop.f32.mrf.mxu0
    %v466 = vadd.f32 %v376, %v465
    %v467 = vpop.f32.mrf.mxu0
    %v468 = vadd.f32 %v376, %v467
    %469 = vmatmul.bf16.gmra.mxu0 %v357
    %v470 = vpop.f32.mrf.mxu0
    %v471 = vadd.f32 %v376, %v470
    %v472 = vpop.f32.mrf.mxu0
    %v473 = vadd.f32 %v376, %v472
    %474 = vdwg.mxu0
    %s475 = sld [smem:[#allocation5]]
    %v476 = vlaneseq
    %v477 = vshrl.u32 %v476, 7
    %v478 = vadd.s32 %v477, 8
    %v479 = vadd.s32 %v477, 16
    %v480 = vadd.s32 %v477, 24
    %v481 = vadd.s32 %v477, 32
    %v482 = vadd.s32 %v477, 40
    %v483 = vadd.s32 %v477, 48
    %v484 = vadd.s32 %v477, 56
    %v485 = vadd.s32 %v477, 64
    %v486 = vadd.s32 %v477, 72
    %v487 = vadd.s32 %v477, 80
    %v488 = vadd.s32 %v477, 88
    %v489 = vadd.s32 %v477, 96
    %v490 = vadd.s32 %v477, 104
    %v491 = vadd.s32 %v477, 112
    %v492 = vadd.s32 %v477, 120
    %v493 = vstv %s475
    %vm494 = vcmp.lt.s32.totalorder %v477, %v493
    %vm495 = vcmp.lt.s32.totalorder %v478, %v493
    %vm496 = vcmp.lt.s32.totalorder %v479, %v493
    %vm497 = vcmp.lt.s32.totalorder %v480, %v493
    %vm498 = vcmp.lt.s32.totalorder %v481, %v493
    %vm499 = vcmp.lt.s32.totalorder %v482, %v493
    %vm500 = vcmp.lt.s32.totalorder %v483, %v493
    %vm501 = vcmp.lt.s32.totalorder %v484, %v493
    %vm502 = vcmp.lt.s32.totalorder %v485, %v493
    %vm503 = vcmp.lt.s32.totalorder %v486, %v493
    %vm504 = vcmp.lt.s32.totalorder %v487, %v493
    %vm505 = vcmp.lt.s32.totalorder %v488, %v493
    %vm506 = vcmp.lt.s32.totalorder %v489, %v493
    %vm507 = vcmp.lt.s32.totalorder %v490, %v493
    %vm508 = vcmp.lt.s32.totalorder %v491, %v493
    %vm509 = vcmp.lt.s32.totalorder %v492, %v493
    %v510 = vsel %vm494, 1, 0
    %v511 = vsel %vm495, 1, 0
    %v512 = vsel %vm496, 1, 0
    %v513 = vsel %vm497, 1, 0
    %v514 = vsel %vm498, 1, 0
    %v515 = vsel %vm499, 1, 0
    %v516 = vsel %vm500, 1, 0
    %v517 = vsel %vm501, 1, 0
    %v518 = vsel %vm502, 1, 0
    %v519 = vsel %vm503, 1, 0
    %v520 = vsel %vm504, 1, 0
    %v521 = vsel %vm505, 1, 0
    %v522 = vsel %vm506, 1, 0
    %v523 = vsel %vm507, 1, 0
    %v524 = vsel %vm508, 1, 0
    %v525 = vsel %vm509, 1, 0
    %vm526 = vcmp.eq.s32.totalorder %v510, 1
    %vm527 = vcmp.eq.s32.totalorder %v511, 1
    %vm528 = vcmp.eq.s32.totalorder %v512, 1
    %vm529 = vcmp.eq.s32.totalorder %v513, 1
    %vm530 = vcmp.eq.s32.totalorder %v514, 1
    %vm531 = vcmp.eq.s32.totalorder %v515, 1
    %vm532 = vcmp.eq.s32.totalorder %v516, 1
    %vm533 = vcmp.eq.s32.totalorder %v517, 1
    %vm534 = vcmp.eq.s32.totalorder %v518, 1
    %vm535 = vcmp.eq.s32.totalorder %v519, 1
    %vm536 = vcmp.eq.s32.totalorder %v520, 1
    %vm537 = vcmp.eq.s32.totalorder %v521, 1
    %vm538 = vcmp.eq.s32.totalorder %v522, 1
    %vm539 = vcmp.eq.s32.totalorder %v523, 1
    %vm540 = vcmp.eq.s32.totalorder %v524, 1
    %vm541 = vcmp.eq.s32.totalorder %v525, 1
    %v542 = vsel %vm526, %v436, -1e+09
    %v543 = vsel %vm527, %v438, -1e+09
    %v544 = vsel %vm528, %v441, -1e+09
    %v545 = vsel %vm529, %v443, -1e+09
    %v546 = vsel %vm530, %v446, -1e+09
    %v547 = vsel %vm531, %v448, -1e+09
    %v548 = vsel %vm532, %v451, -1e+09
    %v549 = vsel %vm533, %v453, -1e+09
    %v550 = vsel %vm534, %v456, -1e+09
    %v551 = vsel %vm535, %v458, -1e+09
    %v552 = vsel %vm536, %v461, -1e+09
    %v553 = vsel %vm537, %v463, -1e+09
    %v554 = vsel %vm538, %v466, -1e+09
    %v555 = vsel %vm539, %v468, -1e+09
    %v556 = vsel %vm540, %v471, -1e+09
    %v557 = vsel %vm541, %v473, -1e+09
    %558 = vmax.xlane.f32.xlu0 %v542
    %v559 = vpop.xlane.xlu0 %558
    %560 = vmax.xlane.f32.xlu0 %v543
    %v561 = vpop.xlane.xlu0 %560
    %562 = vmax.xlane.f32.xlu0 %v544
    %v563 = vpop.xlane.xlu0 %562
    %564 = vmax.xlane.f32.xlu0 %v545
    %v565 = vpop.xlane.xlu0 %564
    %566 = vmax.xlane.f32.xlu0 %v546
    %v567 = vpop.xlane.xlu0 %566
    %568 = vmax.xlane.f32.xlu0 %v547
    %v569 = vpop.xlane.xlu0 %568
    %570 = vmax.xlane.f32.xlu0 %v548
    %v571 = vpop.xlane.xlu0 %570
    %572 = vmax.xlane.f32.xlu0 %v549
    %v573 = vpop.xlane.xlu0 %572
    %574 = vmax.xlane.f32.xlu0 %v550
    %v575 = vpop.xlane.xlu0 %574
    %576 = vmax.xlane.f32.xlu0 %v551
    %v577 = vpop.xlane.xlu0 %576
    %578 = vmax.xlane.f32.xlu0 %v552
    %v579 = vpop.xlane.xlu0 %578
    %580 = vmax.xlane.f32.xlu0 %v553
    %v581 = vpop.xlane.xlu0 %580
    %582 = vmax.xlane.f32.xlu0 %v554
    %v583 = vpop.xlane.xlu0 %582
    %584 = vmax.xlane.f32.xlu0 %v555
    %v585 = vpop.xlane.xlu0 %584
    %586 = vmax.xlane.f32.xlu0 %v556
    %v587 = vpop.xlane.xlu0 %586
    %588 = vmax.xlane.f32.xlu0 %v557
    %v589 = vpop.xlane.xlu0 %588
    %v590 = vmax.f32 %v559, %v567
    %v591 = vmax.f32 %v561, %v569
    %v592 = vmax.f32 %v563, %v571
    %v593 = vmax.f32 %v565, %v573
    %v594 = vmax.f32 %v590, %v575
    %v595 = vmax.f32 %v591, %v577
    %v596 = vmax.f32 %v592, %v579
    %v597 = vmax.f32 %v593, %v581
    %v598 = vmax.f32 %v594, %v583
    %v599 = vmax.f32 %v595, %v585
    %v600 = vmax.f32 %v596, %v587
    %v601 = vmax.f32 %v597, %v589
    %v602 = vmax.f32 %v598, %v599
    %v603 = vmax.f32 %v600, %v601
    %v604 = vmax.f32 %v602, %v603
    %v605 = vrot.slane %v604, 4
    %v606 = vmax.f32 %v604, %v605
    %v607 = vrot.slane %v606, 2
    %v608 = vmax.f32 %v606, %v607
    %v609 = vrot.slane %v608, 1
    %v610 = vmax.f32 %v608, %v609
    %v611 = vld [vmem:[#allocation2] sm:$0x1]
    %v612 = vmax.f32 %v611, %v610
    %vm613 = vcmask 0
    %614 = vst.msk [vmem:[#allocation2] sm:$0x1] %vm613, %v612
    %v616 = vperm.slane %v612, 0
    %617 = vset.pattern.permute.xlu0 0
    %618 = vperm.xlu0 %617, %v616
    %v619 = vpop.permute.xlu0 %618
    %v621 = vsub.f32 %v542, %v619
    %v622 = vsub.f32 %v543, %v619
    %v623 = vsub.f32 %v544, %v619
    %v624 = vsub.f32 %v545, %v619
    %v625 = vsub.f32 %v546, %v619
    %v626 = vsub.f32 %v547, %v619
    %v627 = vsub.f32 %v548, %v619
    %v628 = vsub.f32 %v549, %v619
    %v629 = vsub.f32 %v550, %v619
    %v630 = vsub.f32 %v551, %v619
    %v631 = vsub.f32 %v552, %v619
    %v632 = vsub.f32 %v553, %v619
    %v633 = vsub.f32 %v554, %v619
    %v634 = vsub.f32 %v555, %v619
    %v635 = vsub.f32 %v556, %v619
    %v636 = vsub.f32 %v557, %v619
    %v637 = vmul.f32 %v621, 8.0
    %v638 = vmul.f32 %v622, 8.0
    %v639 = vmul.f32 %v623, 8.0
    %v640 = vmul.f32 %v624, 8.0
    %v641 = vmul.f32 %v625, 8.0
    %v642 = vmul.f32 %v626, 8.0
    %v643 = vmul.f32 %v627, 8.0
    %v644 = vmul.f32 %v628, 8.0
    %v645 = vmul.f32 %v629, 8.0
    %v646 = vmul.f32 %v630, 8.0
    %v647 = vmul.f32 %v631, 8.0
    %v648 = vmul.f32 %v632, 8.0
    %v649 = vmul.f32 %v633, 8.0
    %v650 = vmul.f32 %v634, 8.0
    %v651 = vmul.f32 %v635, 8.0
    %v652 = vmul.f32 %v636, 8.0
    %v653 = vmul.f32 %v637, 1.442695
    %v654 = vpow.pop %v653
    %v655 = vmul.f32 %v638, 1.442695
    %v656 = vpow.pop %v655
    %v657 = vmul.f32 %v639, 1.442695
    %v658 = vpow.pop %v657
    %v659 = vmul.f32 %v640, 1.442695
    %v660 = vpow.pop %v659
    %v661 = vmul.f32 %v641, 1.442695
    %v662 = vpow.pop %v661
    %v663 = vmul.f32 %v642, 1.442695
    %v664 = vpow.pop %v663
    %v665 = vmul.f32 %v643, 1.442695
    %v666 = vpow.pop %v665
    %v667 = vmul.f32 %v644, 1.442695
    %v668 = vpow.pop %v667
    %v669 = vmul.f32 %v645, 1.442695
    %v670 = vpow.pop %v669
    %v671 = vmul.f32 %v646, 1.442695
    %v672 = vpow.pop %v671
    %v673 = vmul.f32 %v647, 1.442695
    %v674 = vpow.pop %v673
    %v675 = vmul.f32 %v648, 1.442695
    %v676 = vpow.pop %v675
    %v677 = vmul.f32 %v649, 1.442695
    %v678 = vpow.pop %v677
    %v679 = vmul.f32 %v650, 1.442695
    %v680 = vpow.pop %v679
    %v681 = vmul.f32 %v651, 1.442695
    %v682 = vpow.pop %v681
    %v683 = vmul.f32 %v652, 1.442695
    %v684 = vpow.pop %v683
    %v685 = vpack.c.bf16 %v656, %v654
    %v686 = vpack.c.bf16 %v660, %v658
    %v687 = vpack.c.bf16 %v664, %v662
    %v688 = vpack.c.bf16 %v668, %v666
    %v689 = vpack.c.bf16 %v672, %v670
    %v690 = vpack.c.bf16 %v676, %v674
    %v691 = vpack.c.bf16 %v680, %v678
    %v692 = vpack.c.bf16 %v684, %v682
    %v693 = vld [vmem:[%s3] sm:$0x1]
    %v694 = vperm.slane %v693, 0
    %vm695 = vcmp.eq.s32.totalorder %v477, %v694
    %vm696 = vcmp.eq.s32.totalorder %v478, %v694
    %vm697 = vcmp.eq.s32.totalorder %v479, %v694
    %v698 = vsel %vm695, 1, 0
    %v699 = vsel %vm696, 1, 0
    %v700 = vsel %vm697, 1, 0
    %v701 = vcvt.s32.f32 %v698
    %v702 = vcvt.s32.f32 %v699
    %v703 = vcvt.s32.f32 %v700
    %v704 = vpack.c.bf16 %v702, %v701
    %v705 = vpack.c.bf16 %v703, %v703
    %706 = vmatpush.bf16.msra.mxu0 %v692
    %707 = vmatpush.bf16.msra.mxu0 %v691
    %708 = vmatpush.bf16.msra.mxu0 %v690
    %709 = vmatpush.bf16.msra.mxu0 %v689
    %710 = vmatpush.bf16.msra.mxu0 %v688
    %711 = vmatpush.bf16.msra.mxu0 %v687
    %712 = vmatpush.bf16.msra.mxu0 %v686
    %713 = vmatpush.bf16.msra.mxu0 %v685
    %714 = vmatmul.bf16.gmra.mxu0 %v704
    %v715 = vpop.f32.mrf.mxu0
    %v716 = vadd.f32 0.0, %v715
    %v717 = vpop.f32.mrf.mxu0
    %v718 = vadd.f32 0.0, %v717
    %719 = vmatmul.bf16.gmra.mxu0 %v705
    %v720 = vpop.f32.mrf.mxu0
    %v721 = vadd.f32 0.0, %v720
    %v722 = vpop.f32.mrf.mxu0
    %723 = vdwg.mxu0
    %v724 = vld [vmem:[#allocation15] sm:$0xff]
    %v725 = vld [vmem:[#allocation15 + $0x8] sm:$0xff]
    %v726 = vld [vmem:[#allocation15 + $0x10] sm:$0xff]
    %v727 = vsub.f32 %v611, %v612
    %v728 = vmul.f32 %v727, 8.0
    %v729 = vmul.f32 %v728, 1.442695
    %v730 = vpow.pop %v729
    %v732 = vperm.slane %v730, 0
    %733 = vset.pattern.permute.xlu0 0
    %734 = vperm.xlu0 %733, %v732
    %v735 = vpop.permute.xlu0 %734
    %v737 = vmul.f32 %v724, %v735
    %v738 = vmul.f32 %v725, %v735
    %v739 = vmul.f32 %v726, %v735
    %v740 = vadd.f32 %v737, %v716
    %v741 = vadd.f32 %v738, %v718
    %v742 = vadd.f32 %v739, %v721
    %743 = vst [vmem:[#allocation15] sm:$0xff] %v740
    %744 = vst [vmem:[#allocation15 + $0x8] sm:$0xff] %v741
    %745 = vst [vmem:[#allocation15 + $0x10] sm:$0xff] %v742
    // Predicated region
    $region54: #{tpu_custom_call.1} parent=1 // pred_check
      %p746 = pneg %p140
    $region55: #{tpu_custom_call.1} parent=1 // pred_check_branch
      %748 = sbr.rel (%p746) target = $region57
    $region56: #{tpu_custom_call.1} parent=1 // pred_region
      %v749 = vld [vmem:[#allocation2] sm:$0x1]
      %750 = vst.msk [vmem:[#allocation16] sm:$0x1] %vm613, %v749
    $region57: #{tpu_custom_call.1} parent=1 // pred_fallthru
      _
    // Predicated region
    $region58: #{tpu_custom_call.1} parent=1 // pred_check
      _
    $region59: #{tpu_custom_call.1} parent=1 // pred_check_branch
      %752 = sbr.rel (0) target = $region61
    $region60: #{tpu_custom_call.1} parent=1 // pred_region
      %754 = vsyncadd [#allocation9], 0
      %s755 = sshll.u32 [#allocation15], 4
      %s756 = int_to_ptr.vmem [resolvable:$true] %s755
      %s757 = sshll.u32 %s10, 4
      %s758 = int_to_ptr.hbm [resolvable:$true] %s757
      %763 = dma.vmem_to_hbm [thread:$0]  %s756, 384, %s758, [#allocation9], 128, 128, 8
    $region61: #{tpu_custom_call.1} parent=1 // pred_fallthru
      _
    // Predicated region
    $region62: #{tpu_custom_call.1} parent=1 // pred_check
      _
    $region63: #{tpu_custom_call.1} parent=1 // pred_check_branch
      %765 = sbr.rel (0) target = $region65
    $region64: #{tpu_custom_call.1} parent=1 // pred_region
      %767 = vsyncadd [#allocation17], 0
      %s769 = sshll.u32 [#allocation16], 4
      %s770 = int_to_ptr.vmem [resolvable:$true] %s769
      %s771 = sshll.u32 %s11, 4
      %s772 = int_to_ptr.hbm [resolvable:$true] %s771
      %774 = dma.vmem_to_hbm [thread:$0]  %s770, 16, %s772, [#allocation17]
    $region65: #{tpu_custom_call.1} parent=1 // pred_fallthru
      _
    // Predicated region
    $region66: #{tpu_custom_call.1} parent=1 // pred_check
      _
    $region67: #{tpu_custom_call.1} parent=1 // pred_check_branch
      %776 = sbr.rel (0) target = $region69
    $region68: #{tpu_custom_call.1} parent=1 // pred_region
      %778 = dma.done [#allocation9], 384
    $region69: #{tpu_custom_call.1} parent=1 // pred_fallthru
      _
    // Predicated region
    $region70: #{tpu_custom_call.1} parent=1 // pred_check
      _
    $region71: #{tpu_custom_call.1} parent=1 // pred_check_branch
      %780 = sbr.rel (0) target = $region73
    $region72: #{tpu_custom_call.1} parent=1 // pred_region
      %782 = dma.done [#allocation17], 16
    $region73: #{tpu_custom_call.1} parent=1 // pred_fallthru
      _
    %783 = vsyncpa [#allocation8], 1
    %784 = vsyncpa [#allocation11], 1
    %785 = vsyncpa [#allocation14], 1
    %786 = vsyncpa [#allocation9], 1
    %787 = vsyncpa [#allocation17], 1

</llo_original>
